<compile_context>
chip_gen: v7x
topology: tpu7x:2x2x1
jax: 0.10.0
libtpu: 0.0.40
codegen_flags: <defaults>
</compile_context>

<pallas_src>
import math

import jax
import jax.numpy as jnp
from jax.experimental import pallas as pl
from jax.experimental.pallas import tpu as pltpu


def _round_up(x, m):
    return (x + m - 1) // m * m


def _keyp_inverse_kernel(k_ref, w1s_ref, w2_ref, w3_ref, b_ref, o_ref, kshift_ref):
    # k_ref     : (R, 2K)   f32  keypoint frames, one row per (batch, t), t fastest
    # w1s_ref   : (4K, H)   f32  stacked [W1a - W1b ; W1b]
    # w2_ref    : (H, H)    f32
    # w3_ref    : (H, A)    f32
    # b_ref     : (3, P)    f32  packed biases (row 0: b1, row 1: b2, row 2: b3)
    # o_ref     : (R, A)    f32  one row per (batch, t); t == T-1 rows are don't-care
    # kshift_ref: (R+8, 2K) f32  scratch used to realize the one-frame shift
    R, twoK = k_ref.shape
    H = w2_ref.shape[0]
    A = o_ref.shape[1]

    b1 = b_ref[0:1, 0:H]
    b2 = b_ref[1:2, 0:H]
    b3 = b_ref[2:3, 0:A]

    k = k_ref[...]                          # (R, 2K) keypoints for frames t
    kshift_ref[0:R, :] = k                  # aligned store into scratch
    # one-row-shifted view == keypoints for frames t+1.  The last row of the
    # block (a t == T-1 row) reads uninitialized scratch; its output row is
    # discarded in the wrapper, so that is harmless.
    k_next = kshift_ref[pl.ds(1, R), :]

    w1ab = w1s_ref[0:twoK, :]               # W1a - W1b   (multiplies k_t)
    w1b = w1s_ref[twoK:2 * twoK, :]         # W1b         (multiplies k_{t+1})

    # fc1 + relu:  cat(k_t, k_{t+1}-k_t) @ W1 == k_t @ (W1a-W1b) + k_{t+1} @ W1b
    h1 = (jnp.dot(k, w1ab, preferred_element_type=jnp.float32)
          + jnp.dot(k_next, w1b, preferred_element_type=jnp.float32) + b1)
    h1 = jnp.maximum(h1, 0.0)

    # fc2 + relu
    h2 = jnp.dot(h1, w2_ref[...], preferred_element_type=jnp.float32) + b2
    h2 = jnp.maximum(h2, 0.0)

    # fc3 (no activation)
    out = jnp.dot(h2, w3_ref[...], preferred_element_type=jnp.float32) + b3
    o_ref[...] = out.astype(o_ref.dtype)


def keyp_inverse_forward(keyp_seq, params, *, target_rows=2048):
    """keyp_seq: (B, T, K, 2) float32 -> (B, T-1, action_dim) float32."""
    B, T, K, two = keyp_seq.shape
    assert two == 2 and T >= 2
    w1, b1, w2, b2, w3, b3 = params          # weights in (in, out) layout (== torch W.T)
    twoK = 2 * K
    H = w1.shape[1]
    A = w3.shape[1]

    # ---- wrapper-side glue: no copies of the keypoint stream ----------------
    # (B, T, K, 2) -> (B*T, 2K) is a free, contiguous reshape; dtype stays f32.
    k_flat = keyp_seq.reshape(B * T, twoK).astype(jnp.float32)

    # Stacked fc1 weight: rows [0:2K] = W1a - W1b, rows [2K:4K] = W1b.
    w1a, w1b_ = w1[:twoK], w1[twoK:]
    w1s = jnp.concatenate([w1a - w1b_, w1b_], axis=0).astype(jnp.float32)   # (4K, H)
    w2f = w2.astype(jnp.float32)
    w3f = w3.astype(jnp.float32)

    # Packed, lane-aligned bias buffer (operand-count / prologue micro-opt).
    P = _round_up(max(H, A), 128)
    bias = jnp.zeros((3, P), jnp.float32)
    bias = bias.at[0, :H].set(b1.astype(jnp.float32))
    bias = bias.at[1, :H].set(b2.astype(jnp.float32))
    bias = bias.at[2, :A].set(b3.astype(jnp.float32))

    # ---- batch-aligned row blocks -------------------------------------------
    # Each grid step processes tb whole trajectories (R = tb*T rows) so the
    # in-kernel one-frame shift never crosses a block boundary.  tb is chosen
    # so (a) R is a multiple of 8 (sublane tiling) unless the block is the
    # whole array, (b) blocks are large (per-step overhead dominates at these
    # tiny feature sizes), and (c) there are >= 2 grid steps when possible so
    # the "parallel" axis can be sharded across both v7x TensorCores.
    align = 8 // math.gcd(T, 8)                    # tb multiple => R multiple of 8
    steps = max(2, pl.cdiv(B * T, max(target_rows, 1)))
    tb = pl.cdiv(B, steps)
    tb = pl.cdiv(tb, align) * align
    if tb >= B:
        tb = B                                     # single full block (always legal)
    R = tb * T
    grid = (pl.cdiv(B, tb),)

    out = pl.pallas_call(
        _keyp_inverse_kernel,
        out_shape=jax.ShapeDtypeStruct((B * T, A), jnp.float32),
        grid=grid,
        in_specs=[
            pl.BlockSpec((R, twoK), lambda i: (i, 0)),          # keypoints: streamed once
            pl.BlockSpec((2 * twoK, H), lambda i: (0, 0)),      # stacked fc1 weight: resident
            pl.BlockSpec((H, H), lambda i: (0, 0)),             # fc2 weight: resident
            pl.BlockSpec((H, A), lambda i: (0, 0)),             # fc3 weight: resident
            pl.BlockSpec((3, P), lambda i: (0, 0)),             # packed biases: resident
        ],
        out_specs=pl.BlockSpec((R, A), lambda i: (i, 0)),
        scratch_shapes=[pltpu.VMEM((R + 8, twoK), jnp.float32)],
        compiler_params=pltpu.CompilerParams(
            dimension_semantics=("parallel",),
            vmem_limit_bytes=48 * 1024 * 1024),
    )(k_flat, w1s, w2f, w3f, bias)

    # Rows with t == T-1 are don't-care; drop them (output is tiny: A lanes).
    return out.reshape(B, T, A)[:, :T - 1, :]


def init_params(key, num_keypoints, action_dim, hidden=64):
    """Deterministic synthetic weights. Stored as (in, out) == PyTorch W.T."""
    k1, k2, k3, k4, k5, k6 = jax.random.split(key, 6)
    in1 = 4 * num_keypoints
    w1 = jax.random.normal(k1, (in1, hidden), jnp.float32) * 0.1
    b1 = jax.random.normal(k2, (hidden,), jnp.float32) * 0.1
    w2 = jax.random.normal(k3, (hidden, hidden), jnp.float32) * 0.1
    b2 = jax.random.normal(k4, (hidden,), jnp.float32) * 0.1
    w3 = jax.random.normal(k5, (hidden, action_dim), jnp.float32) * 0.1
    b3 = jax.random.normal(k6, (action_dim,), jnp.float32) * 0.1
    return (w1, b1, w2, b2, w3, b3)


def _reference(keyp_seq, params):
    """Pure-JAX f32 reference mirroring the PyTorch loop."""
    w1, b1, w2, b2, w3, b3 = params
    B, T, K, _ = keyp_seq.shape
    outs = []
    for t in range(T - 1):
        kt = keyp_seq[:, t].reshape(B, -1)
        kt1 = keyp_seq[:, t + 1].reshape(B, -1)
        x = jnp.concatenate([kt, kt1 - kt], axis=1)
        x = jax.nn.relu(x @ w1 + b1)
        x = jax.nn.relu(x @ w2 + b2)
        x = x @ w3 + b3
        outs.append(x)
    return jnp.stack(outs, axis=1)


if __name__ == "__main__":
    num_keypoints = 8
    action_dim = 4

    key = jax.random.PRNGKey(0)
    k_inp, k_par, k_inp2 = jax.random.split(key, 3)
    params = init_params(k_par, num_keypoints, action_dim)

    # Small demo shape (module convention: B x T x K x 2); grid = 2 steps of 1 batch.
    B, T = 2, 8
    keyp_seq = jax.random.normal(k_inp, (B, T, num_keypoints, 2), jnp.float32)
    pred = jax.block_until_ready(keyp_inverse_forward(keyp_seq, params))
    ref = _reference(keyp_seq, params)
    assert pred.shape == (B, T - 1, action_dim)
    # Kernel runs entirely in f32; tolerance only covers possible reduced-precision
    # MXU passes on either side of the comparison.
    assert jnp.allclose(pred, ref, atol=2e-2, rtol=2e-2)

    # Second call: multi-step grid, T not a multiple of 8, partial last block.
    B2, T2 = 40, 9
    keyp_seq2 = jax.random.normal(k_inp2, (B2, T2, num_keypoints, 2), jnp.float32)
    pred2 = jax.block_until_ready(
        keyp_inverse_forward(keyp_seq2, params, target_rows=128))
    ref2 = _reference(keyp_seq2, params)
    assert pred2.shape == (B2, T2 - 1, action_dim)
    assert jnp.allclose(pred2, ref2, atol=2e-2, rtol=2e-2)

    print("KERNEL_OK")
</pallas_src>

<mosaic_0001>
module attributes {stable_mosaic.version = 11 : i64} {
  func.func @_keyp_inverse_kernel(%arg0: i32, %arg1: memref<8x16xf32, #tpu.memory_space<vmem>>, %arg2: memref<32x64xf32, #tpu.memory_space<vmem>>, %arg3: memref<64x64xf32, #tpu.memory_space<vmem>>, %arg4: memref<64x4xf32, #tpu.memory_space<vmem>>, %arg5: memref<3x128xf32, #tpu.memory_space<vmem>>, %arg6: memref<8x4xf32, #tpu.memory_space<vmem>>, %arg7: memref<16x16xf32, #tpu.memory_space<vmem>>) attributes {dimension_semantics = [#tpu.dimension_semantics<parallel>], iteration_bounds = array<i64: 2>, scalar_prefetch = 0 : i64, scratch_operands = 1 : i64, tpu.core_type = #tpu.core_type<tc>, window_params = [{transform_indices = @transform_0, window_bounds = array<i64: 8, 16>}, {pipeline_mode = #tpu.pipeline_mode<synchronous>, transform_indices = @transform_1, window_bounds = array<i64: 32, 64>}, {pipeline_mode = #tpu.pipeline_mode<synchronous>, transform_indices = @transform_2, window_bounds = array<i64: 64, 64>}, {pipeline_mode = #tpu.pipeline_mode<synchronous>, transform_indices = @transform_3, window_bounds = array<i64: 64, 4>}, {pipeline_mode = #tpu.pipeline_mode<synchronous>, transform_indices = @transform_4, window_bounds = array<i64: 3, 128>}, {transform_indices = @transform_5, window_bounds = array<i64: 8, 4>}]} {
    %c0 = arith.constant 0 : index
    %c0_0 = arith.constant 0 : index
    %0 = vector.load %arg5[%c0, %c0_0] : memref<3x128xf32, #tpu.memory_space<vmem>>, vector<1x64xf32>
    %c1 = arith.constant 1 : index
    %c0_1 = arith.constant 0 : index
    %1 = vector.load %arg5[%c1, %c0_1] : memref<3x128xf32, #tpu.memory_space<vmem>>, vector<1x64xf32>
    %c2 = arith.constant 2 : index
    %c0_2 = arith.constant 0 : index
    %2 = vector.load %arg5[%c2, %c0_2] : memref<3x128xf32, #tpu.memory_space<vmem>>, vector<1x4xf32>
    %c0_3 = arith.constant 0 : index
    %c0_4 = arith.constant 0 : index
    %3 = vector.load %arg1[%c0_3, %c0_4] : memref<8x16xf32, #tpu.memory_space<vmem>>, vector<8x16xf32>
    %c0_5 = arith.constant 0 : index
    %c0_6 = arith.constant 0 : index
    %4 = vector.load %arg7[%c0_5, %c0_6] : memref<16x16xf32, #tpu.memory_space<vmem>>, vector<8x16xf32>
    tpu.vector_store %arg7[%c0_5, %c0_6], %3 {strides = array<i32>} : memref<16x16xf32, #tpu.memory_space<vmem>>, vector<8x16xf32>,
    %c1_7 = arith.constant 1 : index
    %c0_8 = arith.constant 0 : index
    %5 = vector.load %arg7[%c1_7, %c0_8] : memref<16x16xf32, #tpu.memory_space<vmem>>, vector<8x16xf32>
    %c0_9 = arith.constant 0 : index
    %c0_10 = arith.constant 0 : index
    %6 = vector.load %arg2[%c0_9, %c0_10] : memref<32x64xf32, #tpu.memory_space<vmem>>, vector<16x64xf32>
    %c16 = arith.constant 16 : index
    %c0_11 = arith.constant 0 : index
    %7 = vector.load %arg2[%c16, %c0_11] : memref<32x64xf32, #tpu.memory_space<vmem>>, vector<16x64xf32>
    %cst = arith.constant dense<0.000000e+00> : vector<8x64xf32>
    %8 = tpu.matmul %3, %6, %cst {dimension_numbers = #tpu.dot_dimension_numbers<[1], [0], [0], [1], [0, 0, 1, 1], [], []>} : vector<8x16xf32>, vector<16x64xf32>, vector<8x64xf32> -> vector<8x64xf32>
    %cst_12 = arith.constant dense<0.000000e+00> : vector<8x64xf32>
    %9 = tpu.matmul %5, %7, %cst_12 {dimension_numbers = #tpu.dot_dimension_numbers<[1], [0], [0], [1], [0, 0, 1, 1], [], []>} : vector<8x16xf32>, vector<16x64xf32>, vector<8x64xf32> -> vector<8x64xf32>
    %10 = arith.addf %8, %9 : vector<8x64xf32>
    %11 = vector.broadcast %0 : vector<1x64xf32> to vector<8x64xf32>
    %12 = arith.addf %10, %11 : vector<8x64xf32>
    %cst_13 = arith.constant 0.000000e+00 : f32
    %13 = vector.broadcast %cst_13 : f32 to vector<8x64xf32>
    %14 = arith.maximumf %12, %13 : vector<8x64xf32>
    %c0_14 = arith.constant 0 : index
    %c0_15 = arith.constant 0 : index
    %15 = vector.load %arg3[%c0_14, %c0_15] : memref<64x64xf32, #tpu.memory_space<vmem>>, vector<64x64xf32>
    %cst_16 = arith.constant dense<0.000000e+00> : vector<8x64xf32>
    %16 = tpu.matmul %14, %15, %cst_16 {dimension_numbers = #tpu.dot_dimension_numbers<[1], [0], [0], [1], [0, 0, 1, 1], [], []>} : vector<8x64xf32>, vector<64x64xf32>, vector<8x64xf32> -> vector<8x64xf32>
    %17 = vector.broadcast %1 : vector<1x64xf32> to vector<8x64xf32>
    %18 = arith.addf %16, %17 : vector<8x64xf32>
    %cst_17 = arith.constant 0.000000e+00 : f32
    %19 = vector.broadcast %cst_17 : f32 to vector<8x64xf32>
    %20 = arith.maximumf %18, %19 : vector<8x64xf32>
    %c0_18 = arith.constant 0 : index
    %c0_19 = arith.constant 0 : index
    %21 = vector.load %arg4[%c0_18, %c0_19] : memref<64x4xf32, #tpu.memory_space<vmem>>, vector<64x4xf32>
    %cst_20 = arith.constant dense<0.000000e+00> : vector<8x4xf32>
    %22 = tpu.matmul %20, %21, %cst_20 {dimension_numbers = #tpu.dot_dimension_numbers<[1], [0], [0], [1], [0, 0, 1, 1], [], []>} : vector<8x64xf32>, vector<64x4xf32>, vector<8x4xf32> -> vector<8x4xf32>
    %23 = vector.broadcast %2 : vector<1x4xf32> to vector<8x4xf32>
    %24 = arith.addf %22, %23 : vector<8x4xf32>
    %c0_21 = arith.constant 0 : index
    %c0_22 = arith.constant 0 : index
    %25 = vector.load %arg6[%c0_21, %c0_22] : memref<8x4xf32, #tpu.memory_space<vmem>>, vector<8x4xf32>
    tpu.vector_store %arg6[%c0_21, %c0_22], %24 {strides = array<i32>} : memref<8x4xf32, #tpu.memory_space<vmem>>, vector<8x4xf32>,
    return
  }
  func.func @transform_0(%arg0: i32) -> (i32, i32) {
    %c0_i32 = arith.constant 0 : i32
    %c0_i32_0 = arith.constant 0 : i32
    return %arg0, %c0_i32 : i32, i32
  }
  func.func @transform_1(%arg0: i32) -> (i32, i32) {
    %c0_i32 = arith.constant 0 : i32
    %c0_i32_0 = arith.constant 0 : i32
    %c0_i32_1 = arith.constant 0 : i32
    return %c0_i32, %c0_i32_0 : i32, i32
  }
  func.func @transform_2(%arg0: i32) -> (i32, i32) {
    %c0_i32 = arith.constant 0 : i32
    %c0_i32_0 = arith.constant 0 : i32
    %c0_i32_1 = arith.constant 0 : i32
    return %c0_i32, %c0_i32_0 : i32, i32
  }
  func.func @transform_3(%arg0: i32) -> (i32, i32) {
    %c0_i32 = arith.constant 0 : i32
    %c0_i32_0 = arith.constant 0 : i32
    %c0_i32_1 = arith.constant 0 : i32
    return %c0_i32, %c0_i32_0 : i32, i32
  }
  func.func @transform_4(%arg0: i32) -> (i32, i32) {
    %c0_i32 = arith.constant 0 : i32
    %c0_i32_0 = arith.constant 0 : i32
    %c0_i32_1 = arith.constant 0 : i32
    return %c0_i32, %c0_i32_0 : i32, i32
  }
  func.func @transform_5(%arg0: i32) -> (i32, i32) {
    %c0_i32 = arith.constant 0 : i32
    %c0_i32_0 = arith.constant 0 : i32
    return %arg0, %c0_i32 : i32, i32
  }
}

</mosaic_0001>

<llo_original>
// kernel: tpu_custom_call.1
$region0: #{tpu_custom_call.1}
  #allocation0 [shape = 'u32[]', space=smem, size = 0x4, offset = 0x4, fixed_abs, tag = 'smem constant byte address 0x4 - core index']
  #allocation1 [shape = 'u32[144,128]{1,0:T(1,128)}', space=vmem, size = 0x12000, scoped, tag = 'internal scratch']
  #allocation2 [shape = 'f32[16,16]{1,0:T(8,128)}', space=vmem, size = 0x2000, scoped, tag = 'scratch operand']
  %s0 = inlined_call_operand.hbm [shape: f32[16,16], index: 0, kind: input, shape index: {}]
  %s1 = inlined_call_operand.hbm [shape: f32[32,64], index: 1, kind: input, shape index: {}]
  %s2 = inlined_call_operand.vmem [shape: f32[64,64], index: 2, kind: input, shape index: {}]
  %s3 = inlined_call_operand.vmem [shape: f32[64,4], index: 3, kind: input, shape index: {}]
  %s4 = inlined_call_operand.vmem [shape: f32[3,128], index: 4, kind: input, shape index: {}]
  %s5 = inlined_call_operand.vmem [shape: f32[16,4], index: 5, kind: output, shape index: {}]
  %s6 = sld [smem:[#allocation0]]
  $region61: #{tpu_custom_call.1} parent=0
    _
  %s8 = ssub.s32 1, %s6
  %s9 = scalar_select 0, %s8, %s6
  $region1: #{tpu_custom_call.1} parent=0
    #allocation3 [shape = 'u8[8192]{0}', space=vmem, size = 0x2000, scoped, tag = 'input window, operand 0']
    #allocation4 [shape = 's32[2]{0}', space=sflag, size = 0x8, scoped, tag = 'scoped memory for tpu_custom_call.1']
    #allocation5 [shape = 'u8[16384]{0}', space=vmem, size = 0x4000, scoped, tag = 'input window, operand 1, single buffered']
    #allocation6 [shape = 's32[1]{0}', space=sflag, size = 0x4, scoped, tag = 'scoped memory for tpu_custom_call.1']
    %10 = vsyncpa [#allocation4], 0
    %s11 = scalar_lea.sflag [#allocation4], 1
    %12 = vsyncpa %s11, 0
    %13 = vsyncpa [#allocation6], 0
    loop: start=0, step=1, limit=4
    $region2: #{tpu_custom_call.1} parent=1 // loop_pre_header
      _
    $region3: #{tpu_custom_call.1} parent=1 // loop_header
      %s15 = sphi 0, %s19
      %p16 = scmp.ge.s32.totalorder %s15, 4
      %s25 = sphi 0, %s27
      %s28 = sphi 0, %s25
      %s29 = sphi 0, %s28
      %s45 = sphi 0, %s29
      %s49 = sphi 0, %s49
      %s51 = sphi 0, %s49
      %s52 = sphi 0, %s51
      %s66 = sphi 0, %s52
      %s70 = sphi 0, %s70
      %s72 = sphi 0, %s70
      %s73 = sphi 0, %s72
      %s87 = sphi 0, %s73
      %s91 = sphi 0, %s91
      %s93 = sphi 0, %s91
      %s94 = sphi 0, %s93
      %s108 = sphi 0, %s94
      %s112 = sphi 0, %s112
      %s114 = sphi 0, %s112
      %s115 = sphi 0, %s114
      %s129 = sphi 0, %s115
      %s135 = sphi 0, %s137
      %s138 = sphi 0, %s135
      %s139 = sphi 0, %s138
      %s155 = sphi 0, %s139
    $region4: #{tpu_custom_call.1} parent=1 // loop_header_branch
      %18 = sbr.rel (%p16) target = $region8
    $region5: #{tpu_custom_call.1} parent=1 // loop_body
      %s20 = ssub.s32 %s15, 1
      %s21 = ssub.s32 %s15, 2
      %s22 = sadd.s32 %s15, 1
      %s23 = ssub.s32 %s15, %s22
      %p24 = scmp.eq.s32.totalorder %s23, 0
      %s26 = sadd.s32 %s25, 1
      %s27 = scalar_select %p24, %s25, %s26
      %p30 = pneg %p24
      %p31 = scmp.eq.s32.totalorder %s15, 1
      %p32 = por %p30, %p31
      %p33 = scmp.ne.s32.totalorder %s25, %s28
      %p34 = scmp.eq.s32.totalorder %s15, 0
      %p35 = por %p33, %p34
      %p36 = scmp.ne.s32.totalorder %s25, %s28
      %p37 = scmp.eq.s32.totalorder %s20, 1
      %p38 = por %p36, %p37
      %p39 = scmp.ne.s32.totalorder %s28, %s29
      %p40 = scmp.eq.s32.totalorder %s20, 0
      %p41 = por %p39, %p40
      %p42 = scmp.ne.s32.totalorder %s28, %s29
      %p43 = scmp.eq.s32.totalorder %s21, 1
      %p44 = por %p42, %p43
      %p46 = scmp.ne.s32.totalorder %s29, %s45
      %p47 = scmp.eq.s32.totalorder %s21, 0
      %p48 = por %p46, %p47
      %s50 = sadd.s32 %s49, 1
      %p53 = scmp.eq.s32.totalorder %s15, 1
      %p54 = scmp.ne.s32.totalorder %s49, %s51
      %p55 = scmp.eq.s32.totalorder %s15, 0
      %p56 = por %p54, %p55
      %p57 = scmp.ne.s32.totalorder %s49, %s51
      %p58 = scmp.eq.s32.totalorder %s20, 1
      %p59 = por %p57, %p58
      %p60 = scmp.ne.s32.totalorder %s51, %s52
      %p61 = scmp.eq.s32.totalorder %s20, 0
      %p62 = por %p60, %p61
      %p63 = scmp.ne.s32.totalorder %s51, %s52
      %p64 = scmp.eq.s32.totalorder %s21, 1
      %p65 = por %p63, %p64
      %p67 = scmp.ne.s32.totalorder %s52, %s66
      %p68 = scmp.eq.s32.totalorder %s21, 0
      %p69 = por %p67, %p68
      %s71 = sadd.s32 %s70, 1
      %p74 = scmp.eq.s32.totalorder %s15, 1
      %p75 = scmp.ne.s32.totalorder %s70, %s72
      %p76 = scmp.eq.s32.totalorder %s15, 0
      %p77 = por %p75, %p76
      %p78 = scmp.ne.s32.totalorder %s70, %s72
      %p79 = scmp.eq.s32.totalorder %s20, 1
      %p80 = por %p78, %p79
      %p81 = scmp.ne.s32.totalorder %s72, %s73
      %p82 = scmp.eq.s32.totalorder %s20, 0
      %p83 = por %p81, %p82
      %p84 = scmp.ne.s32.totalorder %s72, %s73
      %p85 = scmp.eq.s32.totalorder %s21, 1
      %p86 = por %p84, %p85
      %p88 = scmp.ne.s32.totalorder %s73, %s87
      %p89 = scmp.eq.s32.totalorder %s21, 0
      %p90 = por %p88, %p89
      %s92 = sadd.s32 %s91, 1
      %p95 = scmp.eq.s32.totalorder %s15, 1
      %p96 = scmp.ne.s32.totalorder %s91, %s93
      %p97 = scmp.eq.s32.totalorder %s15, 0
      %p98 = por %p96, %p97
      %p99 = scmp.ne.s32.totalorder %s91, %s93
      %p100 = scmp.eq.s32.totalorder %s20, 1
      %p101 = por %p99, %p100
      %p102 = scmp.ne.s32.totalorder %s93, %s94
      %p103 = scmp.eq.s32.totalorder %s20, 0
      %p104 = por %p102, %p103
      %p105 = scmp.ne.s32.totalorder %s93, %s94
      %p106 = scmp.eq.s32.totalorder %s21, 1
      %p107 = por %p105, %p106
      %p109 = scmp.ne.s32.totalorder %s94, %s108
      %p110 = scmp.eq.s32.totalorder %s21, 0
      %p111 = por %p109, %p110
      %s113 = sadd.s32 %s112, 1
      %p116 = scmp.eq.s32.totalorder %s15, 1
      %p117 = scmp.ne.s32.totalorder %s112, %s114
      %p118 = scmp.eq.s32.totalorder %s15, 0
      %p119 = por %p117, %p118
      %p120 = scmp.ne.s32.totalorder %s112, %s114
      %p121 = scmp.eq.s32.totalorder %s20, 1
      %p122 = por %p120, %p121
      %p123 = scmp.ne.s32.totalorder %s114, %s115
      %p124 = scmp.eq.s32.totalorder %s20, 0
      %p125 = por %p123, %p124
      %p126 = scmp.ne.s32.totalorder %s114, %s115
      %p127 = scmp.eq.s32.totalorder %s21, 1
      %p128 = por %p126, %p127
      %p130 = scmp.ne.s32.totalorder %s115, %s129
      %p131 = scmp.eq.s32.totalorder %s21, 0
      %p132 = por %p130, %p131
      %s133 = ssub.s32 %s15, %s22
      %p134 = scmp.eq.s32.totalorder %s133, 0
      %s136 = sadd.s32 %s135, 1
      %s137 = scalar_select %p134, %s135, %s136
      %p140 = pneg %p134
      %p141 = scmp.eq.s32.totalorder %s15, 1
      %p142 = por %p140, %p141
      %p143 = scmp.ne.s32.totalorder %s135, %s138
      %p144 = scmp.eq.s32.totalorder %s15, 0
      %p145 = por %p143, %p144
      %p146 = scmp.ne.s32.totalorder %s135, %s138
      %p147 = scmp.eq.s32.totalorder %s20, 1
      %p148 = por %p146, %p147
      %p149 = scmp.ne.s32.totalorder %s138, %s139
      %p150 = scmp.eq.s32.totalorder %s20, 0
      %p151 = por %p149, %p150
      %p152 = scmp.ne.s32.totalorder %s138, %s139
      %p153 = scmp.eq.s32.totalorder %s21, 1
      %p154 = por %p152, %p153
      %p156 = scmp.ne.s32.totalorder %s139, %s155
      %p157 = scmp.eq.s32.totalorder %s21, 0
      %p158 = por %p156, %p157
      %p159 = scmp.le.s32.totalorder 1, %s15
      %p160 = scmp.lt.s32.totalorder %s15, 3
      %p161 = pnand %p159, %p160
      %p162 = pneg %p161
      // Predicated region
      $region9: #{tpu_custom_call.1} parent=5 // pred_check
        _
      $region10: #{tpu_custom_call.1} parent=5 // pred_check_branch
        %164 = sbr.rel (%p161) target = $region12
      $region11: #{tpu_custom_call.1} parent=5 // pred_region
        %s165 = ssub.s32 %s15, 1
        // Predicated region
        $region13: #{tpu_custom_call.1} parent=11 // pred_check
          %p166 = pneg %p62
        $region14: #{tpu_custom_call.1} parent=11 // pred_check_branch
          %168 = sbr.rel (%p166) target = $region16
        $region15: #{tpu_custom_call.1} parent=11 // pred_region
          %s170 = ssub.s32 512, 512
          %171 = vsyncadd [#allocation6], %s170
          %s172 = sshll.u32 [#allocation5], 4
          %s173 = int_to_ptr.vmem [resolvable:$true] %s172
          %178 = dma.hbm_to_vmem [thread:$0]  %s1, 512, %s173, [#allocation6], 128, 128, 8
        $region16: #{tpu_custom_call.1} parent=11 // pred_fallthru
          _
        // Predicated region
        $region17: #{tpu_custom_call.1} parent=11 // pred_check
          %p179 = pneg %p83
        $region18: #{tpu_custom_call.1} parent=11 // pred_check_branch
          %181 = sbr.rel (%p179) target = $region20
        $region19: #{tpu_custom_call.1} parent=11 // pred_region
          _
        $region20: #{tpu_custom_call.1} parent=11 // pred_fallthru
          _
        // Predicated region
        $region21: #{tpu_custom_call.1} parent=11 // pred_check
          %p182 = pneg %p104
        $region22: #{tpu_custom_call.1} parent=11 // pred_check_branch
          %184 = sbr.rel (%p182) target = $region24
        $region23: #{tpu_custom_call.1} parent=11 // pred_region
          _
        $region24: #{tpu_custom_call.1} parent=11 // pred_fallthru
          _
        // Predicated region
        $region25: #{tpu_custom_call.1} parent=11 // pred_check
          %p185 = pneg %p125
        $region26: #{tpu_custom_call.1} parent=11 // pred_check_branch
          %187 = sbr.rel (%p185) target = $region28
        $region27: #{tpu_custom_call.1} parent=11 // pred_region
          _
        $region28: #{tpu_custom_call.1} parent=11 // pred_fallthru
          _
      $region12: #{tpu_custom_call.1} parent=5 // pred_fallthru
        _
      %p188 = scmp.lt.s32.totalorder %s15, 2
      // Predicated region
      $region29: #{tpu_custom_call.1} parent=5 // pred_check
        %p189 = pneg %p188
      $region30: #{tpu_custom_call.1} parent=5 // pred_check_branch
        %191 = sbr.rel (%p189) target = $region32
      $region31: #{tpu_custom_call.1} parent=5 // pred_region
        // Predicated region
        $region33: #{tpu_custom_call.1} parent=31 // pred_check
          %p192 = pneg %p35
        $region34: #{tpu_custom_call.1} parent=31 // pred_check_branch
          %194 = sbr.rel (%p192) target = $region36
        $region35: #{tpu_custom_call.1} parent=31 // pred_region
          %s195 = sand.u32 %s25, 1
          %s196 = scalar_lea.sflag [#allocation4], %s195
          %s197 = sand.u32 %s25, 1
          %s198 = smul.addr %s197, 8
          %s199 = scalar_lea.vmem [#allocation3], %s198
          %s201 = ssub.s32 128, 128
          %202 = vsyncadd %s196, %s201
          %s203 = smul.addr %s15, 128
          %s204 = scalar_lea.hbm %s0, %s203
          %s206 = sshll.u32 %s199, 4
          %s207 = int_to_ptr.vmem [resolvable:$true] %s206
          %209 = dma.hbm_to_vmem [thread:$0]  %s204, 128, %s207, %s196
        $region36: #{tpu_custom_call.1} parent=31 // pred_fallthru
          _
      $region32: #{tpu_custom_call.1} parent=5 // pred_fallthru
        _
      %p210 = scmp.le.s32.totalorder 1, %s15
      %p211 = scmp.lt.s32.totalorder %s15, 3
      %p212 = pnand %p210, %p211
      %p213 = pneg %p212
      // Predicated region
      $region37: #{tpu_custom_call.1} parent=5 // pred_check
        _
      $region38: #{tpu_custom_call.1} parent=5 // pred_check_branch
        %215 = sbr.rel (%p212) target = $region40
      $region39: #{tpu_custom_call.1} parent=5 // pred_region
        %s216 = ssub.s32 %s15, 1
        %s217 = sand.u32 %s28, 1
        %s218 = scalar_lea.sflag [#allocation4], %s217
        %s219 = sand.u32 %s28, 1
        %s220 = smul.addr %s219, 8
        %s221 = scalar_lea.vmem [#allocation3], %s220
        // Predicated region
        $region41: #{tpu_custom_call.1} parent=39 // pred_check
          %p222 = pneg %p41
        $region42: #{tpu_custom_call.1} parent=39 // pred_check_branch
          %224 = sbr.rel (%p222) target = $region44
        $region43: #{tpu_custom_call.1} parent=39 // pred_region
          %225 = dma.done %s218, 128
        $region44: #{tpu_custom_call.1} parent=39 // pred_fallthru
          _
        // Predicated region
        $region45: #{tpu_custom_call.1} parent=39 // pred_check
          %p226 = pneg %p62
        $region46: #{tpu_custom_call.1} parent=39 // pred_check_branch
          %228 = sbr.rel (%p226) target = $region48
        $region47: #{tpu_custom_call.1} parent=39 // pred_region
          %229 = dma.done [#allocation6], 512
        $region48: #{tpu_custom_call.1} parent=39 // pred_fallthru
          _
        %s230 = sand.u32 %s28, 1
        %s231 = scalar_lea.sflag [#allocation4], %s230
        %s232 = sand.u32 %s28, 1
        %s233 = smul.addr %s232, 8
        %s234 = scalar_lea.vmem [#allocation3], %s233
        %p235 = pneg %p41
        %p236 = pneg %p38
        %p237 = pneg %p62
        %p238 = pneg %p59
        %p239 = pneg %p83
        %p240 = pneg %p80
        %p241 = pneg %p104
        %p242 = pneg %p101
        %p243 = pneg %p125
        %p244 = pneg %p122
        %p245 = pneg %p151
        %p246 = pneg %p148
        %p247 = scmp.lt.s32.totalorder %s20, 1
        %s248 = scalar_select %p247, %s20, 1
        %s249 = smul.addr %s248, 8
        %s250 = scalar_lea.vmem %s5, %s249
        %p251 = scmp.lt.s32.totalorder %s20, 1
        %s252 = scalar_select %p251, %s20, 1
        %s253 = smul.addr %s252, 8
        %s254 = scalar_lea.vmem %s5, %s253
        %v255 = vld [vmem:[%s4] sm:$0x1]
        %v256 = vld [vmem:[%s4 + $0x1] sm:$0x1]
        %v257 = vld [vmem:[%s4 + $0x2] sm:$0x1]
        %v258 = vld [vmem:[%s221] sm:$0xff]
        %vm259 = vcmask 130048
        %260 = vst.msk [vmem:[#allocation2] sm:$0xff] %vm259, %v258
        %v261 = vld [vmem:[#allocation2 + $0x1] sm:$0xff]
        %v262 = vld [vmem:[#allocation5] sm:$0xff]
        %v263 = vld [vmem:[#allocation5 + $0x8] sm:$0xff]
        %v264 = vld [vmem:[#allocation5 + $0x10] sm:$0xff]
        %v265 = vld [vmem:[#allocation5 + $0x18] sm:$0xff]
        %v267 = vsel %vm259, %v261, 0
        %269 = vmatprep.subr.mxu0 0.0
        %270 = vmatpush1.msra.mxu0 %v264
        %271 = vmatprep.subr.mxu0 0.0
        %272 = vmatpush1.msra.mxu0 %v265
        %273 = vmatprep.subr.mxu0 0.0
        %274 = vmatpush1.msra.mxu0 0.0
        %275 = vmatprep.subr.mxu0 0.0
        %276 = vmatpush1.msra.mxu0 0.0
        %277 = vmatprep.subr.mxu0 0.0
        %278 = vmatpush1.msra.mxu0 0.0
        %279 = vmatprep.subr.mxu0 0.0
        %280 = vmatpush1.msra.mxu0 0.0
        %281 = vmatprep.subr.mxu0 0.0
        %282 = vmatpush1.msra.mxu0 0.0
        %283 = vmatprep.subr.mxu0 0.0
        %284 = vmatpush1.msra.mxu0 0.0
        %285 = vmatprep.subr.mxu0 0.0
        %286 = vmatpush1.msra.mxu0 0.0
        %287 = vmatprep.subr.mxu0 0.0
        %288 = vmatpush1.msra.mxu0 0.0
        %289 = vmatprep.subr.mxu0 0.0
        %290 = vmatpush1.msra.mxu0 0.0
        %291 = vmatprep.subr.mxu0 0.0
        %292 = vmatpush1.msra.mxu0 0.0
        %293 = vmatprep.subr.mxu0 0.0
        %294 = vmatpush1.msra.mxu0 0.0
        %295 = vmatprep.subr.mxu0 0.0
        %296 = vmatpush1.msra.mxu0 0.0
        %297 = vmatprep.subr.mxu0 0.0
        %298 = vmatpush1.msra.mxu0 0.0
        %299 = vmatprep.subr.mxu0 0.0
        %300 = vmatpush1.msra.mxu0 0.0
        %301 = vmatprep.subr.mxu0 0.0
        %302 = vmatpush1.msra.mxu0 0.0
        %303 = vmatprep.subr.mxu0 0.0
        %304 = vmatpush1.msra.mxu0 0.0
        %305 = vmatprep.subr.mxu0 0.0
        %306 = vmatpush1.msra.mxu0 0.0
        %307 = vmatprep.subr.mxu0 0.0
        %308 = vmatpush1.msra.mxu0 0.0
        %309 = vmatprep.subr.mxu0 0.0
        %310 = vmatpush1.msra.mxu0 0.0
        %311 = vmatprep.subr.mxu0 0.0
        %312 = vmatpush1.msra.mxu0 0.0
        %313 = vmatprep.subr.mxu0 0.0
        %314 = vmatpush1.msra.mxu0 0.0
        %315 = vmatprep.subr.mxu0 0.0
        %316 = vmatpush1.msra.mxu0 0.0
        %317 = vmatprep.subr.mxu0 0.0
        %318 = vmatpush1.msra.mxu0 0.0
        %319 = vmatprep.subr.mxu0 0.0
        %320 = vmatpush1.msra.mxu0 0.0
        %321 = vmatprep.subr.mxu0 0.0
        %322 = vmatpush1.msra.mxu0 0.0
        %323 = vmatprep.subr.mxu0 0.0
        %324 = vmatpush1.msra.mxu0 0.0
        %325 = vmatprep.subr.mxu0 0.0
        %326 = vmatpush1.msra.mxu0 0.0
        %327 = vmatprep.subr.mxu0 0.0
        %328 = vmatpush1.msra.mxu0 0.0
        %329 = vmatprep.subr.mxu0 0.0
        %330 = vmatpush1.msra.mxu0 0.0
        %331 = vmatprep.subr.mxu0 0.0
        %332 = vmatpush1.msra.mxu0 0.0
        %333 = vmatprep.mubr.f32.mxu0 0.0
        %334 = vmatmul.mubr.f32.gmra.mrb[0].mxu0 %v267
        %v335 = vpop.f32.mrb[0].mxu0
        %v336 = vadd.f32 0.0, %v335
        %v337 = vpop.f32.mrb[0].mxu0
        %338 = vdwg.mxu0
        %v340 = vsel %vm259, %v258, 0
        %342 = vmatprep.subr.mxu0 0.0
        %343 = vmatpush1.msra.mxu0 %v262
        %344 = vmatprep.subr.mxu0 0.0
        %345 = vmatpush1.msra.mxu0 %v263
        %346 = vmatprep.subr.mxu0 0.0
        %347 = vmatpush1.msra.mxu0 0.0
        %348 = vmatprep.subr.mxu0 0.0
        %349 = vmatpush1.msra.mxu0 0.0
        %350 = vmatprep.subr.mxu0 0.0
        %351 = vmatpush1.msra.mxu0 0.0
        %352 = vmatprep.subr.mxu0 0.0
        %353 = vmatpush1.msra.mxu0 0.0
        %354 = vmatprep.subr.mxu0 0.0
        %355 = vmatpush1.msra.mxu0 0.0
        %356 = vmatprep.subr.mxu0 0.0
        %357 = vmatpush1.msra.mxu0 0.0
        %358 = vmatprep.subr.mxu0 0.0
        %359 = vmatpush1.msra.mxu0 0.0
        %360 = vmatprep.subr.mxu0 0.0
        %361 = vmatpush1.msra.mxu0 0.0
        %362 = vmatprep.subr.mxu0 0.0
        %363 = vmatpush1.msra.mxu0 0.0
        %364 = vmatprep.subr.mxu0 0.0
        %365 = vmatpush1.msra.mxu0 0.0
        %366 = vmatprep.subr.mxu0 0.0
        %367 = vmatpush1.msra.mxu0 0.0
        %368 = vmatprep.subr.mxu0 0.0
        %369 = vmatpush1.msra.mxu0 0.0
        %370 = vmatprep.subr.mxu0 0.0
        %371 = vmatpush1.msra.mxu0 0.0
        %372 = vmatprep.subr.mxu0 0.0
        %373 = vmatpush1.msra.mxu0 0.0
        %374 = vmatprep.subr.mxu0 0.0
        %375 = vmatpush1.msra.mxu0 0.0
        %376 = vmatprep.subr.mxu0 0.0
        %377 = vmatpush1.msra.mxu0 0.0
        %378 = vmatprep.subr.mxu0 0.0
        %379 = vmatpush1.msra.mxu0 0.0
        %380 = vmatprep.subr.mxu0 0.0
        %381 = vmatpush1.msra.mxu0 0.0
        %382 = vmatprep.subr.mxu0 0.0
        %383 = vmatpush1.msra.mxu0 0.0
        %384 = vmatprep.subr.mxu0 0.0
        %385 = vmatpush1.msra.mxu0 0.0
        %386 = vmatprep.subr.mxu0 0.0
        %387 = vmatpush1.msra.mxu0 0.0
        %388 = vmatprep.subr.mxu0 0.0
        %389 = vmatpush1.msra.mxu0 0.0
        %390 = vmatprep.subr.mxu0 0.0
        %391 = vmatpush1.msra.mxu0 0.0
        %392 = vmatprep.subr.mxu0 0.0
        %393 = vmatpush1.msra.mxu0 0.0
        %394 = vmatprep.subr.mxu0 0.0
        %395 = vmatpush1.msra.mxu0 0.0
        %396 = vmatprep.subr.mxu0 0.0
        %397 = vmatpush1.msra.mxu0 0.0
        %398 = vmatprep.subr.mxu0 0.0
        %399 = vmatpush1.msra.mxu0 0.0
        %400 = vmatprep.subr.mxu0 0.0
        %401 = vmatpush1.msra.mxu0 0.0
        %402 = vmatprep.subr.mxu0 0.0
        %403 = vmatpush1.msra.mxu0 0.0
        %404 = vmatprep.subr.mxu0 0.0
        %405 = vmatpush1.msra.mxu0 0.0
        %406 = vmatprep.mubr.f32.mxu0 0.0
        %407 = vmatmul.mubr.f32.gmra.mrb[0].mxu0 %v340
        %v408 = vpop.f32.mrb[0].mxu0
        %v409 = vadd.f32 %v336, %v408
        %v410 = vpop.f32.mrb[0].mxu0
        %411 = vdwg.mxu0
        %v412 = vlaneseq
        %v413 = vshrl.u32 %v412, 7
        %v414 = vsub.s32 0, %v413
        %v415 = vrot.slane %v255, %v414
        %v416 = vadd.f32 %v409, %v415
        %v417 = vmax.f32 %v416, 0.0
        %v418 = vld [vmem:[%s2] sm:$0xff]
        %v419 = vld [vmem:[%s2 + $0x8] sm:$0xff]
        %v420 = vld [vmem:[%s2 + $0x10] sm:$0xff]
        %v421 = vld [vmem:[%s2 + $0x18] sm:$0xff]
        %v422 = vld [vmem:[%s2 + $0x20] sm:$0xff]
        %v423 = vld [vmem:[%s2 + $0x28] sm:$0xff]
        %v424 = vld [vmem:[%s2 + $0x30] sm:$0xff]
        %v425 = vld [vmem:[%s2 + $0x38] sm:$0xff]
        %v426 = vlaneseq
        %v427 = vshrl.u32 %v426, 7
        %v428 = vsub.s32 0, %v427
        %v429 = vrot.slane %v256, %v428
        %vm430 = vcmask 523264
        %v432 = vsel %vm430, %v417, 0
        %434 = vmatprep.subr.mxu0 0.0
        %435 = vmatpush1.msra.mxu0 %v418
        %436 = vmatprep.subr.mxu0 0.0
        %437 = vmatpush1.msra.mxu0 %v419
        %438 = vmatprep.subr.mxu0 0.0
        %439 = vmatpush1.msra.mxu0 %v420
        %440 = vmatprep.subr.mxu0 0.0
        %441 = vmatpush1.msra.mxu0 %v421
        %442 = vmatprep.subr.mxu0 0.0
        %443 = vmatpush1.msra.mxu0 %v422
        %444 = vmatprep.subr.mxu0 0.0
        %445 = vmatpush1.msra.mxu0 %v423
        %446 = vmatprep.subr.mxu0 0.0
        %447 = vmatpush1.msra.mxu0 %v424
        %448 = vmatprep.subr.mxu0 0.0
        %449 = vmatpush1.msra.mxu0 %v425
        %450 = vmatprep.subr.mxu0 0.0
        %451 = vmatpush1.msra.mxu0 0.0
        %452 = vmatprep.subr.mxu0 0.0
        %453 = vmatpush1.msra.mxu0 0.0
        %454 = vmatprep.subr.mxu0 0.0
        %455 = vmatpush1.msra.mxu0 0.0
        %456 = vmatprep.subr.mxu0 0.0
        %457 = vmatpush1.msra.mxu0 0.0
        %458 = vmatprep.subr.mxu0 0.0
        %459 = vmatpush1.msra.mxu0 0.0
        %460 = vmatprep.subr.mxu0 0.0
        %461 = vmatpush1.msra.mxu0 0.0
        %462 = vmatprep.subr.mxu0 0.0
        %463 = vmatpush1.msra.mxu0 0.0
        %464 = vmatprep.subr.mxu0 0.0
        %465 = vmatpush1.msra.mxu0 0.0
        %466 = vmatprep.subr.mxu0 0.0
        %467 = vmatpush1.msra.mxu0 0.0
        %468 = vmatprep.subr.mxu0 0.0
        %469 = vmatpush1.msra.mxu0 0.0
        %470 = vmatprep.subr.mxu0 0.0
        %471 = vmatpush1.msra.mxu0 0.0
        %472 = vmatprep.subr.mxu0 0.0
        %473 = vmatpush1.msra.mxu0 0.0
        %474 = vmatprep.subr.mxu0 0.0
        %475 = vmatpush1.msra.mxu0 0.0
        %476 = vmatprep.subr.mxu0 0.0
        %477 = vmatpush1.msra.mxu0 0.0
        %478 = vmatprep.subr.mxu0 0.0
        %479 = vmatpush1.msra.mxu0 0.0
        %480 = vmatprep.subr.mxu0 0.0
        %481 = vmatpush1.msra.mxu0 0.0
        %482 = vmatprep.subr.mxu0 0.0
        %483 = vmatpush1.msra.mxu0 0.0
        %484 = vmatprep.subr.mxu0 0.0
        %485 = vmatpush1.msra.mxu0 0.0
        %486 = vmatprep.subr.mxu0 0.0
        %487 = vmatpush1.msra.mxu0 0.0
        %488 = vmatprep.subr.mxu0 0.0
        %489 = vmatpush1.msra.mxu0 0.0
        %490 = vmatprep.subr.mxu0 0.0
        %491 = vmatpush1.msra.mxu0 0.0
        %492 = vmatprep.subr.mxu0 0.0
        %493 = vmatpush1.msra.mxu0 0.0
        %494 = vmatprep.subr.mxu0 0.0
        %495 = vmatpush1.msra.mxu0 0.0
        %496 = vmatprep.subr.mxu0 0.0
        %497 = vmatpush1.msra.mxu0 0.0
        %498 = vmatprep.mubr.f32.mxu0 0.0
        %499 = vmatmul.mubr.f32.gmra.mrb[0].mxu0 %v432
        %v500 = vpop.f32.mrb[0].mxu0
        %v501 = vadd.f32 %v429, %v500
        %v502 = vpop.f32.mrb[0].mxu0
        %503 = vdwg.mxu0
        %v504 = vmax.f32 %v501, 0.0
        %v505 = vld [vmem:[%s3] sm:$0xff]
        %v506 = vld [vmem:[%s3 + $0x8] sm:$0xff]
        %v507 = vld [vmem:[%s3 + $0x10] sm:$0xff]
        %v508 = vld [vmem:[%s3 + $0x18] sm:$0xff]
        %v509 = vld [vmem:[%s3 + $0x20] sm:$0xff]
        %v510 = vld [vmem:[%s3 + $0x28] sm:$0xff]
        %v511 = vld [vmem:[%s3 + $0x30] sm:$0xff]
        %v512 = vld [vmem:[%s3 + $0x38] sm:$0xff]
        %v513 = vlaneseq
        %v514 = vshrl.u32 %v513, 7
        %v515 = vsub.s32 0, %v514
        %v516 = vrot.slane %v257, %v515
        %v518 = vsel %vm430, %v504, 0
        %520 = vmatprep.subr.mxu0 0.0
        %521 = vmatpush1.msra.mxu0 %v505
        %522 = vmatprep.subr.mxu0 0.0
        %523 = vmatpush1.msra.mxu0 %v506
        %524 = vmatprep.subr.mxu0 0.0
        %525 = vmatpush1.msra.mxu0 %v507
        %526 = vmatprep.subr.mxu0 0.0
        %527 = vmatpush1.msra.mxu0 %v508
        %528 = vmatprep.subr.mxu0 0.0
        %529 = vmatpush1.msra.mxu0 %v509
        %530 = vmatprep.subr.mxu0 0.0
        %531 = vmatpush1.msra.mxu0 %v510
        %532 = vmatprep.subr.mxu0 0.0
        %533 = vmatpush1.msra.mxu0 %v511
        %534 = vmatprep.subr.mxu0 0.0
        %535 = vmatpush1.msra.mxu0 %v512
        %536 = vmatprep.subr.mxu0 0.0
        %537 = vmatpush1.msra.mxu0 0.0
        %538 = vmatprep.subr.mxu0 0.0
        %539 = vmatpush1.msra.mxu0 0.0
        %540 = vmatprep.subr.mxu0 0.0
        %541 = vmatpush1.msra.mxu0 0.0
        %542 = vmatprep.subr.mxu0 0.0
        %543 = vmatpush1.msra.mxu0 0.0
        %544 = vmatprep.subr.mxu0 0.0
        %545 = vmatpush1.msra.mxu0 0.0
        %546 = vmatprep.subr.mxu0 0.0
        %547 = vmatpush1.msra.mxu0 0.0
        %548 = vmatprep.subr.mxu0 0.0
        %549 = vmatpush1.msra.mxu0 0.0
        %550 = vmatprep.subr.mxu0 0.0
        %551 = vmatpush1.msra.mxu0 0.0
        %552 = vmatprep.subr.mxu0 0.0
        %553 = vmatpush1.msra.mxu0 0.0
        %554 = vmatprep.subr.mxu0 0.0
        %555 = vmatpush1.msra.mxu0 0.0
        %556 = vmatprep.subr.mxu0 0.0
        %557 = vmatpush1.msra.mxu0 0.0
        %558 = vmatprep.subr.mxu0 0.0
        %559 = vmatpush1.msra.mxu0 0.0
        %560 = vmatprep.subr.mxu0 0.0
        %561 = vmatpush1.msra.mxu0 0.0
        %562 = vmatprep.subr.mxu0 0.0
        %563 = vmatpush1.msra.mxu0 0.0
        %564 = vmatprep.subr.mxu0 0.0
        %565 = vmatpush1.msra.mxu0 0.0
        %566 = vmatprep.subr.mxu0 0.0
        %567 = vmatpush1.msra.mxu0 0.0
        %568 = vmatprep.subr.mxu0 0.0
        %569 = vmatpush1.msra.mxu0 0.0
        %570 = vmatprep.subr.mxu0 0.0
        %571 = vmatpush1.msra.mxu0 0.0
        %572 = vmatprep.subr.mxu0 0.0
        %573 = vmatpush1.msra.mxu0 0.0
        %574 = vmatprep.subr.mxu0 0.0
        %575 = vmatpush1.msra.mxu0 0.0
        %576 = vmatprep.subr.mxu0 0.0
        %577 = vmatpush1.msra.mxu0 0.0
        %578 = vmatprep.subr.mxu0 0.0
        %579 = vmatpush1.msra.mxu0 0.0
        %580 = vmatprep.subr.mxu0 0.0
        %581 = vmatpush1.msra.mxu0 0.0
        %582 = vmatprep.subr.mxu0 0.0
        %583 = vmatpush1.msra.mxu0 0.0
        %584 = vmatprep.mubr.f32.mxu0 0.0
        %585 = vmatmul.mubr.f32.gmra.mrb[0].mxu0 %v518
        %v586 = vpop.f32.mrb[0].mxu0
        %v587 = vadd.f32 %v516, %v586
        %v588 = vpop.f32.mrb[0].mxu0
        %589 = vdwg.mxu0
        %vm590 = vcmask 31744
        %591 = vst.msk [vmem:[%s254] sm:$0xff] %vm590, %v587
        %p592 = scmp.lt.s32.totalorder %s20, 1
        %s593 = scalar_select %p592, %s20, 1
        %s594 = smul.addr %s593, 8
        %s595 = scalar_lea.vmem %s5, %s594
        // Predicated region
        $region49: #{tpu_custom_call.1} parent=39 // pred_check
          %p596 = pneg %p148
        $region50: #{tpu_custom_call.1} parent=39 // pred_check_branch
          %598 = sbr.rel (%p596) target = $region52
        $region51: #{tpu_custom_call.1} parent=39 // pred_region
          _
        $region52: #{tpu_custom_call.1} parent=39 // pred_fallthru
          _
      $region40: #{tpu_custom_call.1} parent=5 // pred_fallthru
        _
      %p599 = scmp.le.s32.totalorder 2, %s15
      // Predicated region
      $region53: #{tpu_custom_call.1} parent=5 // pred_check
        %p600 = pneg %p599
      $region54: #{tpu_custom_call.1} parent=5 // pred_check_branch
        %602 = sbr.rel (%p600) target = $region56
      $region55: #{tpu_custom_call.1} parent=5 // pred_region
        %s603 = ssub.s32 %s15, 2
        // Predicated region
        $region57: #{tpu_custom_call.1} parent=55 // pred_check
          %p604 = pneg %p154
        $region58: #{tpu_custom_call.1} parent=55 // pred_check_branch
          %606 = sbr.rel (%p604) target = $region60
        $region59: #{tpu_custom_call.1} parent=55 // pred_region
          %p607 = scmp.lt.s32.totalorder %s21, 1
          %s608 = scalar_select %p607, %s21, 1
          %s609 = smul.addr %s608, 8
          %s610 = scalar_lea.vmem %s5, %s609
        $region60: #{tpu_custom_call.1} parent=55 // pred_fallthru
          _
      $region56: #{tpu_custom_call.1} parent=5 // pred_fallthru
        _
    $region6: #{tpu_custom_call.1} parent=1 // loop_footer
      %s19 = sadd.s32 1, %s15
    $region7: #{tpu_custom_call.1} parent=1 // loop_footer_branch
      %14 = sbr.rel target = $region3
    $region8: #{tpu_custom_call.1} parent=1 // loop_exit
      _
    %611 = vsyncpa [#allocation4], 1
    %s612 = scalar_lea.sflag [#allocation4], 1
    %613 = vsyncpa %s612, 1
    %614 = vsyncpa [#allocation6], 1

</llo_original>
